<compile_context>
chip_gen: v7x
topology: tpu7x:2x2x1
jax: 0.10.0
libtpu: 0.0.40
codegen_flags: <defaults>
</compile_context>

<pallas_src>
import itertools

import jax
import jax.numpy as jnp
import numpy as np
from jax import lax
from jax.experimental import pallas as pl
from jax.experimental.pallas import tpu as pltpu

BETA = 1.0
_HALF_OVER_BETA = 0.5 / BETA   # hoisted out of the kernel entirely

# Unordered column pairs assigned to target rows {0, 1}; the complement goes
# to rows {2, 3}.  min over the 24 permutations == min over these 6 partitions
# with the two orders inside each half pre-minimized (30 adds + 17 mins).
_PAIRS = ((0, 1), (0, 2), (0, 3), (1, 2), (1, 3), (2, 3))
_COMP = {p: tuple(c for c in range(4) if c not in p) for p in _PAIRS}


def _num_tensorcores():
    """TensorCores a single Pallas kernel can span via a 'parallel' grid axis."""
    try:
        kind = jax.devices()[0].device_kind.lower().replace(" ", "")
    except Exception:
        return 1
    if "lite" in kind or "v5e" in kind or "v6e" in kind:
        return 1                       # v5e / v6e: single TensorCore
    if "v7" in kind or "7x" in kind:
        return 2                       # v7x: 2 TensorCores per chip
    if "v4" in kind or "v5p" in kind or kind.endswith("v5"):
        return 2                       # megacore generations
    return 1                           # unknown -> safe (correct either way)


def _make_kernel(num_sub):
    """Kernel over blocks of (8, 8*num_sub, 128): coord x sublane-rows x lanes."""

    def scaled_sl1(d):
        # smooth_l1(d) == (0.5/BETA) * m * (2|d| - m), with m = min(|d|, BETA).
        # The positive 0.5/BETA factor commutes with min/sum and is applied
        # once on the final scalar in the wrapper, so here it's just
        # abs + min + add + mul (no compare/select, no per-element scale).
        a = jnp.abs(d)
        m = jnp.minimum(a, BETA)
        return m * (a + a - m)

    def chunk(pred_ref, targ_ref, mask_ref, k):
        # One (8, 128)-vreg sub-chunk of the current block.
        if isinstance(k, int):
            start = 8 * k                       # static unroll path
        else:
            start = pl.multiple_of(8 * k, 8)    # fori_loop path: aligned hint
        s = pl.ds(start, 8)

        valid = mask_ref[s, :] != 0.0           # precomputed row-valid mask
        px = [pred_ref[c, s, :] for c in range(8)]   # (8, 128) slabs
        tx = [targ_ref[c, s, :] for c in range(8)]

        # cost[i][j] = scaled smooth_l1(pred point j, target point i) summed
        # over (x, y) -- fully elementwise, no cross-lane reductions.
        cost = [
            [
                scaled_sl1(px[2 * j] - tx[2 * i])
                + scaled_sl1(px[2 * j + 1] - tx[2 * i + 1])
                for j in range(4)
            ]
            for i in range(4)
        ]

        def half(r0, r1, c0, c1):
            return jnp.minimum(cost[r0][c0] + cost[r1][c1],
                               cost[r0][c1] + cost[r1][c0])

        best = None
        for pair in _PAIRS:
            m0, m1 = _COMP[pair]
            tot = half(0, 1, pair[0], pair[1]) + half(2, 3, m0, m1)
            best = tot if best is None else jnp.minimum(best, tot)

        # where() (not multiply) so garbage in masked rows can't poison the sum.
        return jnp.where(valid, best, 0.0)

    def kernel(pred_ref, targ_ref, mask_ref, loss_ref):
        # Resident accumulator: same output block for every inner grid step.
        @pl.when(pl.program_id(1) == 0)
        def _():
            loss_ref[...] = jnp.zeros_like(loss_ref)

        if num_sub <= 4:
            acc = chunk(pred_ref, targ_ref, mask_ref, 0)
            for k in range(1, num_sub):
                acc = acc + chunk(pred_ref, targ_ref, mask_ref, k)
        else:
            # Bounded live ranges for deep blocks: visible loop, light unroll.
            acc = lax.fori_loop(
                0, num_sub,
                lambda k, a: a + chunk(pred_ref, targ_ref, mask_ref, k),
                jnp.zeros((8, 128), jnp.float32),
                unroll=2)

        loss_ref[...] += acc    # single accumulator update per grid step

    return kernel


def hungarian_loss(pred, target, weight, avg_factor, loss_weight=1.0,
                   tile_rows=None):
    """HungarianLoss(form='quad').forward as a Pallas TPU kernel.

    pred, target, weight: (N, 8) arrays.  Returns a scalar float32.
    tile_rows: optional override of sublane-rows (128 samples each) per grid
               step; auto-derived (multiple of 8, <= 256) when None.
    """
    pred = jnp.asarray(pred, jnp.float32)
    target = jnp.asarray(target, jnp.float32)   # target.float() in torch
    weight = jnp.asarray(weight, jnp.float32)
    n = pred.shape[0]

    # ---- grid shaping ------------------------------------------------------
    m = max(1, -(-n // 128))                     # sublane rows of samples
    num_tc = _num_tensorcores()
    n_parts = num_tc if (num_tc > 1 and m >= 16) else 1   # megacore split

    rows_pp = -(-m // n_parts)                   # rows per partition
    rows_pp8 = -(-rows_pp // 8) * 8              # rounded to multiple of 8
    if tile_rows is None:
        want = (rows_pp8 // 4) // 8 * 8          # aim for ~4 pipelined steps
        tile_rows = max(32, min(256, want))      # ~0.3-2 MiB input per step
    tile_rows = max(8, min((tile_rows // 8) * 8, rows_pp8))   # multiple of 8
    inner = -(-rows_pp8 // tile_rows)
    m_pad = n_parts * inner * tile_rows
    n_pad = m_pad * 128
    num_sub = tile_rows // 8

    # ---- host-side repack ----------------------------------------------------
    # Row-valid mask precomputed here (4 B/sample) instead of shipping the full
    # 32 B/sample weight slab; n_valid also comes from it so the kernel has a
    # single output.  NOTE: padding MUST stay zero -> padded rows have mask 0,
    # which keeps the (possibly over-padded) tail tiles exactly neutral.
    valid_f = jnp.any(weight != 0.0, axis=1).astype(jnp.float32)   # (N,)
    n_valid = jnp.sum(valid_f)
    mask = jnp.pad(valid_f, (0, n_pad - n)).reshape(m_pad, 128)

    def prep(x):
        # pad + transpose + reshape fuses to one XLA transpose; a caller that
        # already has coord-major (8, N) data can skip this pass entirely.
        x = jnp.pad(x, ((0, n_pad - n), (0, 0)))
        return x.T.reshape(8, m_pad, 128)        # coord-major, lane-dense

    in_pt = pl.BlockSpec((8, tile_rows, 128), lambda p, i: (0, p * inner + i, 0))
    in_mask = pl.BlockSpec((tile_rows, 128), lambda p, i: (p * inner + i, 0))
    out_spec = pl.BlockSpec((8, 128), lambda p, i: (p, 0))

    loss_acc = pl.pallas_call(
        _make_kernel(num_sub),
        grid=(n_parts, inner),
        in_specs=[in_pt, in_pt, in_mask],
        out_specs=out_spec,
        out_shape=jax.ShapeDtypeStruct((n_parts * 8, 128), jnp.float32),
        compiler_params=pltpu.CompilerParams(
            dimension_semantics=("parallel", "arbitrary")),
    )(prep(pred), prep(target), mask)

    # Hoisted smooth-L1 scale + final reduction over the tiny (n_parts*8, 128)
    # lane-dense accumulator.
    total = jnp.sum(loss_acc) * _HALF_OVER_BETA
    loss = total * loss_weight / avg_factor
    # torch returns a bare 0.0 (no division) when there are no valid rows.
    return jnp.where(n_valid > 0, loss, jnp.float32(0.0))


def _reference(pred, target, weight, avg_factor, loss_weight=1.0):
    """Pure numpy reference (brute force == linear_sum_assignment for 4x4)."""
    pred = np.asarray(pred, np.float64)
    target = np.asarray(target, np.float64)
    weight = np.asarray(weight, np.float64)
    valid = np.any(weight != 0.0, axis=1)
    if not valid.any():
        return 0.0
    p = pred[valid].reshape(-1, 4, 2)
    t = target[valid].reshape(-1, 4, 2)
    d = np.abs(p[:, None, :, :] - t[:, :, None, :])      # (M, 4tgt, 4pred, 2)
    sl1 = np.where(d < BETA, 0.5 * d * d / BETA, d - 0.5 * BETA)
    cost = sl1.sum(-1)                                    # (M, 4, 4)
    best = None
    for perm in itertools.permutations(range(4)):
        c = sum(cost[:, i, perm[i]] for i in range(4))
        best = c if best is None else np.minimum(best, c)
    return float(best.sum() * loss_weight / avg_factor)


if __name__ == "__main__":
    # --- small case (N=16), some rows fully masked out ----------------------
    k1, k2, k3 = jax.random.split(jax.random.PRNGKey(0), 3)
    n = 16
    pred = jax.random.normal(k1, (n, 8), jnp.float32) * 2.0
    target = jax.random.normal(k2, (n, 8), jnp.float32) * 2.0
    row_mask = (jax.random.uniform(k3, (n, 1)) > 0.25).astype(jnp.float32)
    weight = jnp.ones((n, 8), jnp.float32) * row_mask
    avg_factor, loss_weight = 7.0, 1.0

    out = jax.block_until_ready(
        hungarian_loss(pred, target, weight, avg_factor, loss_weight))
    ref = _reference(pred, target, weight, avg_factor, loss_weight)
    np.testing.assert_allclose(float(out), ref, rtol=1e-4, atol=1e-4)

    # --- larger case: auto tile sizing, multi-step grid, padded tail --------
    k4, k5, k6 = jax.random.split(jax.random.PRNGKey(1), 3)
    n2 = 10000
    pred2 = jax.random.normal(k4, (n2, 8), jnp.float32) * 3.0
    target2 = jax.random.normal(k5, (n2, 8), jnp.float32) * 3.0
    mask2 = (jax.random.uniform(k6, (n2, 1)) > 0.3).astype(jnp.float32)
    weight2 = jnp.ones((n2, 8), jnp.float32) * mask2
    ref2 = _reference(pred2, target2, weight2, 123.0, 0.5)

    out2 = jax.block_until_ready(
        hungarian_loss(pred2, target2, weight2, 123.0, 0.5))
    np.testing.assert_allclose(float(out2), ref2, rtol=1e-4, atol=1e-3)

    # --- same data, explicit big tile -> exercises the fori_loop path -------
    out2b = jax.block_until_ready(
        hungarian_loss(pred2, target2, weight2, 123.0, 0.5, tile_rows=80))
    np.testing.assert_allclose(float(out2b), ref2, rtol=1e-4, atol=1e-3)

    # --- no valid rows -> exactly 0.0 ----------------------------------------
    out3 = jax.block_until_ready(
        hungarian_loss(pred, target, jnp.zeros_like(weight), avg_factor))
    assert float(out3) == 0.0

    print("KERNEL_OK")
</pallas_src>

<mosaic_0001>
module attributes {stable_mosaic.version = 11 : i64} {
  func.func @kernel(%arg0: i32, %arg1: i32, %arg2: memref<8x8x128xf32, #tpu.memory_space<vmem>>, %arg3: memref<8x8x128xf32, #tpu.memory_space<vmem>>, %arg4: memref<8x128xf32, #tpu.memory_space<vmem>>, %arg5: memref<8x128xf32, #tpu.memory_space<vmem>>) attributes {dimension_semantics = [#tpu.dimension_semantics<parallel>, #tpu.dimension_semantics<arbitrary>], iteration_bounds = array<i64: 1, 1>, scalar_prefetch = 0 : i64, scratch_operands = 0 : i64, tpu.core_type = #tpu.core_type<tc>, window_params = [{transform_indices = @transform_0, window_bounds = array<i64: 8, 8, 128>}, {transform_indices = @transform_1, window_bounds = array<i64: 8, 8, 128>}, {transform_indices = @transform_2, window_bounds = array<i64: 8, 128>}, {transform_indices = @transform_3, window_bounds = array<i64: 8, 128>}]} {
    %c0_i32 = arith.constant 0 : i32
    %0 = arith.cmpi eq, %arg1, %c0_i32 : i32
    %1 = arith.extui %0 : i1 to i32
    %c0_i32_0 = arith.constant 0 : i32
    %2 = arith.cmpi ne, %1, %c0_i32_0 : i32
    scf.if %2 {
      %cst_80 = arith.constant 0.000000e+00 : f32
      %330 = vector.broadcast %cst_80 : f32 to vector<8x128xf32>
      %c0_81 = arith.constant 0 : index
      %c0_82 = arith.constant 0 : index
      %331 = vector.load %arg5[%c0_81, %c0_82] : memref<8x128xf32, #tpu.memory_space<vmem>>, vector<8x128xf32>
      tpu.vector_store %arg5[%c0_81, %c0_82], %330 {strides = array<i32>} : memref<8x128xf32, #tpu.memory_space<vmem>>, vector<8x128xf32>,
    } else {
    }
    %c0 = arith.constant 0 : index
    %c0_1 = arith.constant 0 : index
    %3 = vector.load %arg4[%c0, %c0_1] : memref<8x128xf32, #tpu.memory_space<vmem>>, vector<8x128xf32>
    %cst = arith.constant 0.000000e+00 : f32
    %4 = vector.broadcast %cst : f32 to vector<8x128xf32>
    %5 = arith.cmpf one, %3, %4 : vector<8x128xf32>
    %c0_2 = arith.constant 0 : index
    %c0_3 = arith.constant 0 : index
    %c0_4 = arith.constant 0 : index
    %6 = vector.load %arg2[%c0_2, %c0_3, %c0_4] : memref<8x8x128xf32, #tpu.memory_space<vmem>>, vector<1x8x128xf32>
    %7 = vector.shape_cast %6 : vector<1x8x128xf32> to vector<8x128xf32>
    %c1 = arith.constant 1 : index
    %c0_5 = arith.constant 0 : index
    %c0_6 = arith.constant 0 : index
    %8 = vector.load %arg2[%c1, %c0_5, %c0_6] : memref<8x8x128xf32, #tpu.memory_space<vmem>>, vector<1x8x128xf32>
    %9 = vector.shape_cast %8 : vector<1x8x128xf32> to vector<8x128xf32>
    %c2 = arith.constant 2 : index
    %c0_7 = arith.constant 0 : index
    %c0_8 = arith.constant 0 : index
    %10 = vector.load %arg2[%c2, %c0_7, %c0_8] : memref<8x8x128xf32, #tpu.memory_space<vmem>>, vector<1x8x128xf32>
    %11 = vector.shape_cast %10 : vector<1x8x128xf32> to vector<8x128xf32>
    %c3 = arith.constant 3 : index
    %c0_9 = arith.constant 0 : index
    %c0_10 = arith.constant 0 : index
    %12 = vector.load %arg2[%c3, %c0_9, %c0_10] : memref<8x8x128xf32, #tpu.memory_space<vmem>>, vector<1x8x128xf32>
    %13 = vector.shape_cast %12 : vector<1x8x128xf32> to vector<8x128xf32>
    %c4 = arith.constant 4 : index
    %c0_11 = arith.constant 0 : index
    %c0_12 = arith.constant 0 : index
    %14 = vector.load %arg2[%c4, %c0_11, %c0_12] : memref<8x8x128xf32, #tpu.memory_space<vmem>>, vector<1x8x128xf32>
    %15 = vector.shape_cast %14 : vector<1x8x128xf32> to vector<8x128xf32>
    %c5 = arith.constant 5 : index
    %c0_13 = arith.constant 0 : index
    %c0_14 = arith.constant 0 : index
    %16 = vector.load %arg2[%c5, %c0_13, %c0_14] : memref<8x8x128xf32, #tpu.memory_space<vmem>>, vector<1x8x128xf32>
    %17 = vector.shape_cast %16 : vector<1x8x128xf32> to vector<8x128xf32>
    %c6 = arith.constant 6 : index
    %c0_15 = arith.constant 0 : index
    %c0_16 = arith.constant 0 : index
    %18 = vector.load %arg2[%c6, %c0_15, %c0_16] : memref<8x8x128xf32, #tpu.memory_space<vmem>>, vector<1x8x128xf32>
    %19 = vector.shape_cast %18 : vector<1x8x128xf32> to vector<8x128xf32>
    %c7 = arith.constant 7 : index
    %c0_17 = arith.constant 0 : index
    %c0_18 = arith.constant 0 : index
    %20 = vector.load %arg2[%c7, %c0_17, %c0_18] : memref<8x8x128xf32, #tpu.memory_space<vmem>>, vector<1x8x128xf32>
    %21 = vector.shape_cast %20 : vector<1x8x128xf32> to vector<8x128xf32>
    %c0_19 = arith.constant 0 : index
    %c0_20 = arith.constant 0 : index
    %c0_21 = arith.constant 0 : index
    %22 = vector.load %arg3[%c0_19, %c0_20, %c0_21] : memref<8x8x128xf32, #tpu.memory_space<vmem>>, vector<1x8x128xf32>
    %23 = vector.shape_cast %22 : vector<1x8x128xf32> to vector<8x128xf32>
    %c1_22 = arith.constant 1 : index
    %c0_23 = arith.constant 0 : index
    %c0_24 = arith.constant 0 : index
    %24 = vector.load %arg3[%c1_22, %c0_23, %c0_24] : memref<8x8x128xf32, #tpu.memory_space<vmem>>, vector<1x8x128xf32>
    %25 = vector.shape_cast %24 : vector<1x8x128xf32> to vector<8x128xf32>
    %c2_25 = arith.constant 2 : index
    %c0_26 = arith.constant 0 : index
    %c0_27 = arith.constant 0 : index
    %26 = vector.load %arg3[%c2_25, %c0_26, %c0_27] : memref<8x8x128xf32, #tpu.memory_space<vmem>>, vector<1x8x128xf32>
    %27 = vector.shape_cast %26 : vector<1x8x128xf32> to vector<8x128xf32>
    %c3_28 = arith.constant 3 : index
    %c0_29 = arith.constant 0 : index
    %c0_30 = arith.constant 0 : index
    %28 = vector.load %arg3[%c3_28, %c0_29, %c0_30] : memref<8x8x128xf32, #tpu.memory_space<vmem>>, vector<1x8x128xf32>
    %29 = vector.shape_cast %28 : vector<1x8x128xf32> to vector<8x128xf32>
    %c4_31 = arith.constant 4 : index
    %c0_32 = arith.constant 0 : index
    %c0_33 = arith.constant 0 : index
    %30 = vector.load %arg3[%c4_31, %c0_32, %c0_33] : memref<8x8x128xf32, #tpu.memory_space<vmem>>, vector<1x8x128xf32>
    %31 = vector.shape_cast %30 : vector<1x8x128xf32> to vector<8x128xf32>
    %c5_34 = arith.constant 5 : index
    %c0_35 = arith.constant 0 : index
    %c0_36 = arith.constant 0 : index
    %32 = vector.load %arg3[%c5_34, %c0_35, %c0_36] : memref<8x8x128xf32, #tpu.memory_space<vmem>>, vector<1x8x128xf32>
    %33 = vector.shape_cast %32 : vector<1x8x128xf32> to vector<8x128xf32>
    %c6_37 = arith.constant 6 : index
    %c0_38 = arith.constant 0 : index
    %c0_39 = arith.constant 0 : index
    %34 = vector.load %arg3[%c6_37, %c0_38, %c0_39] : memref<8x8x128xf32, #tpu.memory_space<vmem>>, vector<1x8x128xf32>
    %35 = vector.shape_cast %34 : vector<1x8x128xf32> to vector<8x128xf32>
    %c7_40 = arith.constant 7 : index
    %c0_41 = arith.constant 0 : index
    %c0_42 = arith.constant 0 : index
    %36 = vector.load %arg3[%c7_40, %c0_41, %c0_42] : memref<8x8x128xf32, #tpu.memory_space<vmem>>, vector<1x8x128xf32>
    %37 = vector.shape_cast %36 : vector<1x8x128xf32> to vector<8x128xf32>
    %38 = arith.subf %7, %23 : vector<8x128xf32>
    %39 = math.absf %38 : vector<8x128xf32>
    %cst_43 = arith.constant 1.000000e+00 : f32
    %40 = vector.broadcast %cst_43 : f32 to vector<8x128xf32>
    %41 = arith.minimumf %39, %40 : vector<8x128xf32>
    %42 = arith.addf %39, %39 : vector<8x128xf32>
    %43 = arith.subf %42, %41 : vector<8x128xf32>
    %44 = arith.mulf %41, %43 : vector<8x128xf32>
    %45 = arith.subf %9, %25 : vector<8x128xf32>
    %46 = math.absf %45 : vector<8x128xf32>
    %cst_44 = arith.constant 1.000000e+00 : f32
    %47 = vector.broadcast %cst_44 : f32 to vector<8x128xf32>
    %48 = arith.minimumf %46, %47 : vector<8x128xf32>
    %49 = arith.addf %46, %46 : vector<8x128xf32>
    %50 = arith.subf %49, %48 : vector<8x128xf32>
    %51 = arith.mulf %48, %50 : vector<8x128xf32>
    %52 = arith.addf %44, %51 : vector<8x128xf32>
    %53 = arith.subf %11, %23 : vector<8x128xf32>
    %54 = math.absf %53 : vector<8x128xf32>
    %cst_45 = arith.constant 1.000000e+00 : f32
    %55 = vector.broadcast %cst_45 : f32 to vector<8x128xf32>
    %56 = arith.minimumf %54, %55 : vector<8x128xf32>
    %57 = arith.addf %54, %54 : vector<8x128xf32>
    %58 = arith.subf %57, %56 : vector<8x128xf32>
    %59 = arith.mulf %56, %58 : vector<8x128xf32>
    %60 = arith.subf %13, %25 : vector<8x128xf32>
    %61 = math.absf %60 : vector<8x128xf32>
    %cst_46 = arith.constant 1.000000e+00 : f32
    %62 = vector.broadcast %cst_46 : f32 to vector<8x128xf32>
    %63 = arith.minimumf %61, %62 : vector<8x128xf32>
    %64 = arith.addf %61, %61 : vector<8x128xf32>
    %65 = arith.subf %64, %63 : vector<8x128xf32>
    %66 = arith.mulf %63, %65 : vector<8x128xf32>
    %67 = arith.addf %59, %66 : vector<8x128xf32>
    %68 = arith.subf %15, %23 : vector<8x128xf32>
    %69 = math.absf %68 : vector<8x128xf32>
    %cst_47 = arith.constant 1.000000e+00 : f32
    %70 = vector.broadcast %cst_47 : f32 to vector<8x128xf32>
    %71 = arith.minimumf %69, %70 : vector<8x128xf32>
    %72 = arith.addf %69, %69 : vector<8x128xf32>
    %73 = arith.subf %72, %71 : vector<8x128xf32>
    %74 = arith.mulf %71, %73 : vector<8x128xf32>
    %75 = arith.subf %17, %25 : vector<8x128xf32>
    %76 = math.absf %75 : vector<8x128xf32>
    %cst_48 = arith.constant 1.000000e+00 : f32
    %77 = vector.broadcast %cst_48 : f32 to vector<8x128xf32>
    %78 = arith.minimumf %76, %77 : vector<8x128xf32>
    %79 = arith.addf %76, %76 : vector<8x128xf32>
    %80 = arith.subf %79, %78 : vector<8x128xf32>
    %81 = arith.mulf %78, %80 : vector<8x128xf32>
    %82 = arith.addf %74, %81 : vector<8x128xf32>
    %83 = arith.subf %19, %23 : vector<8x128xf32>
    %84 = math.absf %83 : vector<8x128xf32>
    %cst_49 = arith.constant 1.000000e+00 : f32
    %85 = vector.broadcast %cst_49 : f32 to vector<8x128xf32>
    %86 = arith.minimumf %84, %85 : vector<8x128xf32>
    %87 = arith.addf %84, %84 : vector<8x128xf32>
    %88 = arith.subf %87, %86 : vector<8x128xf32>
    %89 = arith.mulf %86, %88 : vector<8x128xf32>
    %90 = arith.subf %21, %25 : vector<8x128xf32>
    %91 = math.absf %90 : vector<8x128xf32>
    %cst_50 = arith.constant 1.000000e+00 : f32
    %92 = vector.broadcast %cst_50 : f32 to vector<8x128xf32>
    %93 = arith.minimumf %91, %92 : vector<8x128xf32>
    %94 = arith.addf %91, %91 : vector<8x128xf32>
    %95 = arith.subf %94, %93 : vector<8x128xf32>
    %96 = arith.mulf %93, %95 : vector<8x128xf32>
    %97 = arith.addf %89, %96 : vector<8x128xf32>
    %98 = arith.subf %7, %27 : vector<8x128xf32>
    %99 = math.absf %98 : vector<8x128xf32>
    %cst_51 = arith.constant 1.000000e+00 : f32
    %100 = vector.broadcast %cst_51 : f32 to vector<8x128xf32>
    %101 = arith.minimumf %99, %100 : vector<8x128xf32>
    %102 = arith.addf %99, %99 : vector<8x128xf32>
    %103 = arith.subf %102, %101 : vector<8x128xf32>
    %104 = arith.mulf %101, %103 : vector<8x128xf32>
    %105 = arith.subf %9, %29 : vector<8x128xf32>
    %106 = math.absf %105 : vector<8x128xf32>
    %cst_52 = arith.constant 1.000000e+00 : f32
    %107 = vector.broadcast %cst_52 : f32 to vector<8x128xf32>
    %108 = arith.minimumf %106, %107 : vector<8x128xf32>
    %109 = arith.addf %106, %106 : vector<8x128xf32>
    %110 = arith.subf %109, %108 : vector<8x128xf32>
    %111 = arith.mulf %108, %110 : vector<8x128xf32>
    %112 = arith.addf %104, %111 : vector<8x128xf32>
    %113 = arith.subf %11, %27 : vector<8x128xf32>
    %114 = math.absf %113 : vector<8x128xf32>
    %cst_53 = arith.constant 1.000000e+00 : f32
    %115 = vector.broadcast %cst_53 : f32 to vector<8x128xf32>
    %116 = arith.minimumf %114, %115 : vector<8x128xf32>
    %117 = arith.addf %114, %114 : vector<8x128xf32>
    %118 = arith.subf %117, %116 : vector<8x128xf32>
    %119 = arith.mulf %116, %118 : vector<8x128xf32>
    %120 = arith.subf %13, %29 : vector<8x128xf32>
    %121 = math.absf %120 : vector<8x128xf32>
    %cst_54 = arith.constant 1.000000e+00 : f32
    %122 = vector.broadcast %cst_54 : f32 to vector<8x128xf32>
    %123 = arith.minimumf %121, %122 : vector<8x128xf32>
    %124 = arith.addf %121, %121 : vector<8x128xf32>
    %125 = arith.subf %124, %123 : vector<8x128xf32>
    %126 = arith.mulf %123, %125 : vector<8x128xf32>
    %127 = arith.addf %119, %126 : vector<8x128xf32>
    %128 = arith.subf %15, %27 : vector<8x128xf32>
    %129 = math.absf %128 : vector<8x128xf32>
    %cst_55 = arith.constant 1.000000e+00 : f32
    %130 = vector.broadcast %cst_55 : f32 to vector<8x128xf32>
    %131 = arith.minimumf %129, %130 : vector<8x128xf32>
    %132 = arith.addf %129, %129 : vector<8x128xf32>
    %133 = arith.subf %132, %131 : vector<8x128xf32>
    %134 = arith.mulf %131, %133 : vector<8x128xf32>
    %135 = arith.subf %17, %29 : vector<8x128xf32>
    %136 = math.absf %135 : vector<8x128xf32>
    %cst_56 = arith.constant 1.000000e+00 : f32
    %137 = vector.broadcast %cst_56 : f32 to vector<8x128xf32>
    %138 = arith.minimumf %136, %137 : vector<8x128xf32>
    %139 = arith.addf %136, %136 : vector<8x128xf32>
    %140 = arith.subf %139, %138 : vector<8x128xf32>
    %141 = arith.mulf %138, %140 : vector<8x128xf32>
    %142 = arith.addf %134, %141 : vector<8x128xf32>
    %143 = arith.subf %19, %27 : vector<8x128xf32>
    %144 = math.absf %143 : vector<8x128xf32>
    %cst_57 = arith.constant 1.000000e+00 : f32
    %145 = vector.broadcast %cst_57 : f32 to vector<8x128xf32>
    %146 = arith.minimumf %144, %145 : vector<8x128xf32>
    %147 = arith.addf %144, %144 : vector<8x128xf32>
    %148 = arith.subf %147, %146 : vector<8x128xf32>
    %149 = arith.mulf %146, %148 : vector<8x128xf32>
    %150 = arith.subf %21, %29 : vector<8x128xf32>
    %151 = math.absf %150 : vector<8x128xf32>
    %cst_58 = arith.constant 1.000000e+00 : f32
    %152 = vector.broadcast %cst_58 : f32 to vector<8x128xf32>
    %153 = arith.minimumf %151, %152 : vector<8x128xf32>
    %154 = arith.addf %151, %151 : vector<8x128xf32>
    %155 = arith.subf %154, %153 : vector<8x128xf32>
    %156 = arith.mulf %153, %155 : vector<8x128xf32>
    %157 = arith.addf %149, %156 : vector<8x128xf32>
    %158 = arith.subf %7, %31 : vector<8x128xf32>
    %159 = math.absf %158 : vector<8x128xf32>
    %cst_59 = arith.constant 1.000000e+00 : f32
    %160 = vector.broadcast %cst_59 : f32 to vector<8x128xf32>
    %161 = arith.minimumf %159, %160 : vector<8x128xf32>
    %162 = arith.addf %159, %159 : vector<8x128xf32>
    %163 = arith.subf %162, %161 : vector<8x128xf32>
    %164 = arith.mulf %161, %163 : vector<8x128xf32>
    %165 = arith.subf %9, %33 : vector<8x128xf32>
    %166 = math.absf %165 : vector<8x128xf32>
    %cst_60 = arith.constant 1.000000e+00 : f32
    %167 = vector.broadcast %cst_60 : f32 to vector<8x128xf32>
    %168 = arith.minimumf %166, %167 : vector<8x128xf32>
    %169 = arith.addf %166, %166 : vector<8x128xf32>
    %170 = arith.subf %169, %168 : vector<8x128xf32>
    %171 = arith.mulf %168, %170 : vector<8x128xf32>
    %172 = arith.addf %164, %171 : vector<8x128xf32>
    %173 = arith.subf %11, %31 : vector<8x128xf32>
    %174 = math.absf %173 : vector<8x128xf32>
    %cst_61 = arith.constant 1.000000e+00 : f32
    %175 = vector.broadcast %cst_61 : f32 to vector<8x128xf32>
    %176 = arith.minimumf %174, %175 : vector<8x128xf32>
    %177 = arith.addf %174, %174 : vector<8x128xf32>
    %178 = arith.subf %177, %176 : vector<8x128xf32>
    %179 = arith.mulf %176, %178 : vector<8x128xf32>
    %180 = arith.subf %13, %33 : vector<8x128xf32>
    %181 = math.absf %180 : vector<8x128xf32>
    %cst_62 = arith.constant 1.000000e+00 : f32
    %182 = vector.broadcast %cst_62 : f32 to vector<8x128xf32>
    %183 = arith.minimumf %181, %182 : vector<8x128xf32>
    %184 = arith.addf %181, %181 : vector<8x128xf32>
    %185 = arith.subf %184, %183 : vector<8x128xf32>
    %186 = arith.mulf %183, %185 : vector<8x128xf32>
    %187 = arith.addf %179, %186 : vector<8x128xf32>
    %188 = arith.subf %15, %31 : vector<8x128xf32>
    %189 = math.absf %188 : vector<8x128xf32>
    %cst_63 = arith.constant 1.000000e+00 : f32
    %190 = vector.broadcast %cst_63 : f32 to vector<8x128xf32>
    %191 = arith.minimumf %189, %190 : vector<8x128xf32>
    %192 = arith.addf %189, %189 : vector<8x128xf32>
    %193 = arith.subf %192, %191 : vector<8x128xf32>
    %194 = arith.mulf %191, %193 : vector<8x128xf32>
    %195 = arith.subf %17, %33 : vector<8x128xf32>
    %196 = math.absf %195 : vector<8x128xf32>
    %cst_64 = arith.constant 1.000000e+00 : f32
    %197 = vector.broadcast %cst_64 : f32 to vector<8x128xf32>
    %198 = arith.minimumf %196, %197 : vector<8x128xf32>
    %199 = arith.addf %196, %196 : vector<8x128xf32>
    %200 = arith.subf %199, %198 : vector<8x128xf32>
    %201 = arith.mulf %198, %200 : vector<8x128xf32>
    %202 = arith.addf %194, %201 : vector<8x128xf32>
    %203 = arith.subf %19, %31 : vector<8x128xf32>
    %204 = math.absf %203 : vector<8x128xf32>
    %cst_65 = arith.constant 1.000000e+00 : f32
    %205 = vector.broadcast %cst_65 : f32 to vector<8x128xf32>
    %206 = arith.minimumf %204, %205 : vector<8x128xf32>
    %207 = arith.addf %204, %204 : vector<8x128xf32>
    %208 = arith.subf %207, %206 : vector<8x128xf32>
    %209 = arith.mulf %206, %208 : vector<8x128xf32>
    %210 = arith.subf %21, %33 : vector<8x128xf32>
    %211 = math.absf %210 : vector<8x128xf32>
    %cst_66 = arith.constant 1.000000e+00 : f32
    %212 = vector.broadcast %cst_66 : f32 to vector<8x128xf32>
    %213 = arith.minimumf %211, %212 : vector<8x128xf32>
    %214 = arith.addf %211, %211 : vector<8x128xf32>
    %215 = arith.subf %214, %213 : vector<8x128xf32>
    %216 = arith.mulf %213, %215 : vector<8x128xf32>
    %217 = arith.addf %209, %216 : vector<8x128xf32>
    %218 = arith.subf %7, %35 : vector<8x128xf32>
    %219 = math.absf %218 : vector<8x128xf32>
    %cst_67 = arith.constant 1.000000e+00 : f32
    %220 = vector.broadcast %cst_67 : f32 to vector<8x128xf32>
    %221 = arith.minimumf %219, %220 : vector<8x128xf32>
    %222 = arith.addf %219, %219 : vector<8x128xf32>
    %223 = arith.subf %222, %221 : vector<8x128xf32>
    %224 = arith.mulf %221, %223 : vector<8x128xf32>
    %225 = arith.subf %9, %37 : vector<8x128xf32>
    %226 = math.absf %225 : vector<8x128xf32>
    %cst_68 = arith.constant 1.000000e+00 : f32
    %227 = vector.broadcast %cst_68 : f32 to vector<8x128xf32>
    %228 = arith.minimumf %226, %227 : vector<8x128xf32>
    %229 = arith.addf %226, %226 : vector<8x128xf32>
    %230 = arith.subf %229, %228 : vector<8x128xf32>
    %231 = arith.mulf %228, %230 : vector<8x128xf32>
    %232 = arith.addf %224, %231 : vector<8x128xf32>
    %233 = arith.subf %11, %35 : vector<8x128xf32>
    %234 = math.absf %233 : vector<8x128xf32>
    %cst_69 = arith.constant 1.000000e+00 : f32
    %235 = vector.broadcast %cst_69 : f32 to vector<8x128xf32>
    %236 = arith.minimumf %234, %235 : vector<8x128xf32>
    %237 = arith.addf %234, %234 : vector<8x128xf32>
    %238 = arith.subf %237, %236 : vector<8x128xf32>
    %239 = arith.mulf %236, %238 : vector<8x128xf32>
    %240 = arith.subf %13, %37 : vector<8x128xf32>
    %241 = math.absf %240 : vector<8x128xf32>
    %cst_70 = arith.constant 1.000000e+00 : f32
    %242 = vector.broadcast %cst_70 : f32 to vector<8x128xf32>
    %243 = arith.minimumf %241, %242 : vector<8x128xf32>
    %244 = arith.addf %241, %241 : vector<8x128xf32>
    %245 = arith.subf %244, %243 : vector<8x128xf32>
    %246 = arith.mulf %243, %245 : vector<8x128xf32>
    %247 = arith.addf %239, %246 : vector<8x128xf32>
    %248 = arith.subf %15, %35 : vector<8x128xf32>
    %249 = math.absf %248 : vector<8x128xf32>
    %cst_71 = arith.constant 1.000000e+00 : f32
    %250 = vector.broadcast %cst_71 : f32 to vector<8x128xf32>
    %251 = arith.minimumf %249, %250 : vector<8x128xf32>
    %252 = arith.addf %249, %249 : vector<8x128xf32>
    %253 = arith.subf %252, %251 : vector<8x128xf32>
    %254 = arith.mulf %251, %253 : vector<8x128xf32>
    %255 = arith.subf %17, %37 : vector<8x128xf32>
    %256 = math.absf %255 : vector<8x128xf32>
    %cst_72 = arith.constant 1.000000e+00 : f32
    %257 = vector.broadcast %cst_72 : f32 to vector<8x128xf32>
    %258 = arith.minimumf %256, %257 : vector<8x128xf32>
    %259 = arith.addf %256, %256 : vector<8x128xf32>
    %260 = arith.subf %259, %258 : vector<8x128xf32>
    %261 = arith.mulf %258, %260 : vector<8x128xf32>
    %262 = arith.addf %254, %261 : vector<8x128xf32>
    %263 = arith.subf %19, %35 : vector<8x128xf32>
    %264 = math.absf %263 : vector<8x128xf32>
    %cst_73 = arith.constant 1.000000e+00 : f32
    %265 = vector.broadcast %cst_73 : f32 to vector<8x128xf32>
    %266 = arith.minimumf %264, %265 : vector<8x128xf32>
    %267 = arith.addf %264, %264 : vector<8x128xf32>
    %268 = arith.subf %267, %266 : vector<8x128xf32>
    %269 = arith.mulf %266, %268 : vector<8x128xf32>
    %270 = arith.subf %21, %37 : vector<8x128xf32>
    %271 = math.absf %270 : vector<8x128xf32>
    %cst_74 = arith.constant 1.000000e+00 : f32
    %272 = vector.broadcast %cst_74 : f32 to vector<8x128xf32>
    %273 = arith.minimumf %271, %272 : vector<8x128xf32>
    %274 = arith.addf %271, %271 : vector<8x128xf32>
    %275 = arith.subf %274, %273 : vector<8x128xf32>
    %276 = arith.mulf %273, %275 : vector<8x128xf32>
    %277 = arith.addf %269, %276 : vector<8x128xf32>
    %278 = arith.addf %52, %127 : vector<8x128xf32>
    %279 = arith.addf %67, %112 : vector<8x128xf32>
    %280 = arith.minimumf %278, %279 : vector<8x128xf32>
    %281 = arith.addf %202, %277 : vector<8x128xf32>
    %282 = arith.addf %217, %262 : vector<8x128xf32>
    %283 = arith.minimumf %281, %282 : vector<8x128xf32>
    %284 = arith.addf %280, %283 : vector<8x128xf32>
    %285 = arith.addf %52, %142 : vector<8x128xf32>
    %286 = arith.addf %82, %112 : vector<8x128xf32>
    %287 = arith.minimumf %285, %286 : vector<8x128xf32>
    %288 = arith.addf %187, %277 : vector<8x128xf32>
    %289 = arith.addf %217, %247 : vector<8x128xf32>
    %290 = arith.minimumf %288, %289 : vector<8x128xf32>
    %291 = arith.addf %287, %290 : vector<8x128xf32>
    %292 = arith.minimumf %284, %291 : vector<8x128xf32>
    %293 = arith.addf %52, %157 : vector<8x128xf32>
    %294 = arith.addf %97, %112 : vector<8x128xf32>
    %295 = arith.minimumf %293, %294 : vector<8x128xf32>
    %296 = arith.addf %187, %262 : vector<8x128xf32>
    %297 = arith.addf %202, %247 : vector<8x128xf32>
    %298 = arith.minimumf %296, %297 : vector<8x128xf32>
    %299 = arith.addf %295, %298 : vector<8x128xf32>
    %300 = arith.minimumf %292, %299 : vector<8x128xf32>
    %301 = arith.addf %67, %142 : vector<8x128xf32>
    %302 = arith.addf %82, %127 : vector<8x128xf32>
    %303 = arith.minimumf %301, %302 : vector<8x128xf32>
    %304 = arith.addf %172, %277 : vector<8x128xf32>
    %305 = arith.addf %217, %232 : vector<8x128xf32>
    %306 = arith.minimumf %304, %305 : vector<8x128xf32>
    %307 = arith.addf %303, %306 : vector<8x128xf32>
    %308 = arith.minimumf %300, %307 : vector<8x128xf32>
    %309 = arith.addf %67, %157 : vector<8x128xf32>
    %310 = arith.addf %97, %127 : vector<8x128xf32>
    %311 = arith.minimumf %309, %310 : vector<8x128xf32>
    %312 = arith.addf %172, %262 : vector<8x128xf32>
    %313 = arith.addf %202, %232 : vector<8x128xf32>
    %314 = arith.minimumf %312, %313 : vector<8x128xf32>
    %315 = arith.addf %311, %314 : vector<8x128xf32>
    %316 = arith.minimumf %308, %315 : vector<8x128xf32>
    %317 = arith.addf %82, %157 : vector<8x128xf32>
    %318 = arith.addf %97, %142 : vector<8x128xf32>
    %319 = arith.minimumf %317, %318 : vector<8x128xf32>
    %320 = arith.addf %172, %247 : vector<8x128xf32>
    %321 = arith.addf %187, %232 : vector<8x128xf32>
    %322 = arith.minimumf %320, %321 : vector<8x128xf32>
    %323 = arith.addf %319, %322 : vector<8x128xf32>
    %324 = arith.minimumf %316, %323 : vector<8x128xf32>
    %cst_75 = arith.constant 0.000000e+00 : f32
    %325 = vector.broadcast %cst_75 : f32 to vector<8x128xf32>
    %326 = arith.select %5, %324, %325 : vector<8x128xi1>, vector<8x128xf32>
    %c0_76 = arith.constant 0 : index
    %c0_77 = arith.constant 0 : index
    %327 = vector.load %arg5[%c0_76, %c0_77] : memref<8x128xf32, #tpu.memory_space<vmem>>, vector<8x128xf32>
    %328 = arith.addf %327, %326 : vector<8x128xf32>
    %c0_78 = arith.constant 0 : index
    %c0_79 = arith.constant 0 : index
    %329 = vector.load %arg5[%c0_78, %c0_79] : memref<8x128xf32, #tpu.memory_space<vmem>>, vector<8x128xf32>
    tpu.vector_store %arg5[%c0_78, %c0_79], %328 {strides = array<i32>} : memref<8x128xf32, #tpu.memory_space<vmem>>, vector<8x128xf32>,
    return
  }
  func.func @transform_0(%arg0: i32, %arg1: i32) -> (i32, i32, i32) {
    %c1_i32 = arith.constant 1 : i32
    %0 = arith.muli %arg0, %c1_i32 : i32
    %1 = arith.addi %0, %arg1 : i32
    %c0_i32 = arith.constant 0 : i32
    %c0_i32_0 = arith.constant 0 : i32
    %c0_i32_1 = arith.constant 0 : i32
    return %c0_i32, %1, %c0_i32_0 : i32, i32, i32
  }
  func.func @transform_1(%arg0: i32, %arg1: i32) -> (i32, i32, i32) {
    %c1_i32 = arith.constant 1 : i32
    %0 = arith.muli %arg0, %c1_i32 : i32
    %1 = arith.addi %0, %arg1 : i32
    %c0_i32 = arith.constant 0 : i32
    %c0_i32_0 = arith.constant 0 : i32
    %c0_i32_1 = arith.constant 0 : i32
    return %c0_i32, %1, %c0_i32_0 : i32, i32, i32
  }
  func.func @transform_2(%arg0: i32, %arg1: i32) -> (i32, i32) {
    %c1_i32 = arith.constant 1 : i32
    %0 = arith.muli %arg0, %c1_i32 : i32
    %1 = arith.addi %0, %arg1 : i32
    %c0_i32 = arith.constant 0 : i32
    %c0_i32_0 = arith.constant 0 : i32
    return %1, %c0_i32 : i32, i32
  }
  func.func @transform_3(%arg0: i32, %arg1: i32) -> (i32, i32) {
    %c0_i32 = arith.constant 0 : i32
    %c0_i32_0 = arith.constant 0 : i32
    return %arg0, %c0_i32 : i32, i32
  }
}

</mosaic_0001>

<llo_original>
// kernel: tpu_custom_call.1
$region0: #{tpu_custom_call.1}
  #allocation0 [shape = 'u32[]', space=smem, size = 0x4, offset = 0x4, fixed_abs, tag = 'smem constant byte address 0x4 - core index']
  #allocation1 [shape = 'u32[144,128]{1,0:T(1,128)}', space=vmem, size = 0x12000, scoped, tag = 'internal scratch']
  %s0 = inlined_call_operand.hbm [shape: f32[8,8,128], index: 0, kind: input, shape index: {}]
  %s1 = inlined_call_operand.hbm [shape: f32[8,8,128], index: 1, kind: input, shape index: {}]
  %s2 = inlined_call_operand.hbm [shape: f32[8,128], index: 2, kind: input, shape index: {}]
  %s3 = inlined_call_operand.hbm [shape: f32[8,128], index: 3, kind: output, shape index: {}]
  %s4 = sld [smem:[#allocation0]]
  $region38: #{tpu_custom_call.1} parent=0
    _
  %s6 = ssub.s32 1, %s4
  %s7 = scalar_select 0, %s6, %s4
  $region1: #{tpu_custom_call.1} parent=0
    #allocation2 [shape = 'u8[32768]{0}', space=vmem, size = 0x8000, scoped, tag = 'input window, operand 0, single buffered']
    #allocation3 [shape = 's32[1]{0}', space=sflag, size = 0x4, scoped, tag = 'scoped memory for tpu_custom_call.1']
    #allocation4 [shape = 's32[1]{0}', space=sflag, size = 0x4, scoped, tag = 'scoped memory for tpu_custom_call.1']
    #allocation5 [shape = 'u8[32768]{0}', space=vmem, size = 0x8000, scoped, tag = 'input window, operand 1, single buffered']
    #allocation6 [shape = 's32[1]{0}', space=sflag, size = 0x4, scoped, tag = 'scoped memory for tpu_custom_call.1']
    #allocation7 [shape = 'u8[4096]{0}', space=vmem, size = 0x1000, scoped, tag = 'input window, operand 2, single buffered']
    #allocation8 [shape = 'u8[4096]{0}', space=vmem, size = 0x1000, scoped, tag = 'output window, operand 0, single buffered']
    %8 = vsyncpa [#allocation3], 0
    %9 = vsyncpa [#allocation6], 0
    %10 = vsyncpa [#allocation4], 0
    // Predicated region
    $region2: #{tpu_custom_call.1} parent=1 // pred_check
      _
    $region3: #{tpu_custom_call.1} parent=1 // pred_check_branch
      %12 = sbr.rel (0) target = $region5
    $region4: #{tpu_custom_call.1} parent=1 // pred_region
      %s13 = sadd.s32 0, 0
      %s15 = ssub.s32 1024, 1024
      %16 = vsyncadd [#allocation3], %s15
      %s17 = smul.addr %s13, 128
      %s18 = scalar_lea.hbm %s0, %s17
      %s19 = sshll.u32 [#allocation2], 4
      %s20 = int_to_ptr.vmem [resolvable:$true] %s19
      %25 = dma.hbm_to_vmem [thread:$0]  %s18, 1024, %s20, [#allocation3], 128, 128, 8
    $region5: #{tpu_custom_call.1} parent=1 // pred_fallthru
      _
    // Predicated region
    $region6: #{tpu_custom_call.1} parent=1 // pred_check
      _
    $region7: #{tpu_custom_call.1} parent=1 // pred_check_branch
      %27 = sbr.rel (0) target = $region9
    $region8: #{tpu_custom_call.1} parent=1 // pred_region
      %s28 = sadd.s32 0, 0
      %s30 = ssub.s32 1024, 1024
      %31 = vsyncadd [#allocation6], %s30
      %s32 = smul.addr %s28, 128
      %s33 = scalar_lea.hbm %s1, %s32
      %s34 = sshll.u32 [#allocation5], 4
      %s35 = int_to_ptr.vmem [resolvable:$true] %s34
      %40 = dma.hbm_to_vmem [thread:$0]  %s33, 1024, %s35, [#allocation6], 128, 128, 8
    $region9: #{tpu_custom_call.1} parent=1 // pred_fallthru
      _
    // Predicated region
    $region10: #{tpu_custom_call.1} parent=1 // pred_check
      _
    $region11: #{tpu_custom_call.1} parent=1 // pred_check_branch
      %42 = sbr.rel (0) target = $region13
    $region12: #{tpu_custom_call.1} parent=1 // pred_region
      %s43 = sadd.s32 0, 0
      %s45 = ssub.s32 128, 128
      %46 = vsyncadd [#allocation6], %s45
      %s47 = smul.addr %s43, 128
      %s48 = scalar_lea.hbm %s2, %s47
      %s50 = sshll.u32 [#allocation7], 4
      %s51 = int_to_ptr.vmem [resolvable:$true] %s50
      %53 = dma.hbm_to_vmem [thread:$0]  %s48, 128, %s51, [#allocation6]
    $region13: #{tpu_custom_call.1} parent=1 // pred_fallthru
      _
    // Predicated region
    $region14: #{tpu_custom_call.1} parent=1 // pred_check
      _
    $region15: #{tpu_custom_call.1} parent=1 // pred_check_branch
      %55 = sbr.rel (0) target = $region17
    $region16: #{tpu_custom_call.1} parent=1 // pred_region
      %56 = dma.done [#allocation3], 1024
    $region17: #{tpu_custom_call.1} parent=1 // pred_fallthru
      _
    // Predicated region
    $region18: #{tpu_custom_call.1} parent=1 // pred_check
      _
    $region19: #{tpu_custom_call.1} parent=1 // pred_check_branch
      %58 = sbr.rel (0) target = $region21
    $region20: #{tpu_custom_call.1} parent=1 // pred_region
      %59 = dma.done [#allocation6], 1024
    $region21: #{tpu_custom_call.1} parent=1 // pred_fallthru
      _
    // Predicated region
    $region22: #{tpu_custom_call.1} parent=1 // pred_check
      _
    $region23: #{tpu_custom_call.1} parent=1 // pred_check_branch
      %61 = sbr.rel (0) target = $region25
    $region24: #{tpu_custom_call.1} parent=1 // pred_region
      %62 = dma.done [#allocation6], 128
    $region25: #{tpu_custom_call.1} parent=1 // pred_fallthru
      _
    %s63 = sadd.s32 0, 0
    %s64 = sadd.s32 0, 0
    %s65 = sadd.s32 0, 0
    %p66 = scmp.eq.s32.totalorder 0, 0
    // Predicated region
    $region26: #{tpu_custom_call.1} parent=1 // pred_check
      %p67 = pneg %p66
    $region27: #{tpu_custom_call.1} parent=1 // pred_check_branch
      %69 = sbr.rel (%p67) target = $region29
    $region28: #{tpu_custom_call.1} parent=1 // pred_region
      %70 = vst [vmem:[#allocation8] sm:$0xff] 0.0
    $region29: #{tpu_custom_call.1} parent=1 // pred_fallthru
      _
    %v71 = vld [vmem:[#allocation7] sm:$0xff]
    %vm72 = vcmp.ne.f32.partialorder %v71, 0.0
    %v73 = vld [vmem:[#allocation2] sm:$0xff]
    %s74 = scalar_lea.vmem [#allocation2], 8
    %v75 = vld [vmem:[%s74] sm:$0xff]
    %s76 = scalar_lea.vmem [#allocation2], 16
    %v77 = vld [vmem:[%s76] sm:$0xff]
    %s78 = scalar_lea.vmem [#allocation2], 24
    %v79 = vld [vmem:[%s78] sm:$0xff]
    %s80 = scalar_lea.vmem [#allocation2], 32
    %v81 = vld [vmem:[%s80] sm:$0xff]
    %s82 = scalar_lea.vmem [#allocation2], 40
    %v83 = vld [vmem:[%s82] sm:$0xff]
    %s84 = scalar_lea.vmem [#allocation2], 48
    %v85 = vld [vmem:[%s84] sm:$0xff]
    %s86 = scalar_lea.vmem [#allocation2], 56
    %v87 = vld [vmem:[%s86] sm:$0xff]
    %v88 = vld [vmem:[#allocation5] sm:$0xff]
    %s89 = scalar_lea.vmem [#allocation5], 8
    %v90 = vld [vmem:[%s89] sm:$0xff]
    %s91 = scalar_lea.vmem [#allocation5], 16
    %v92 = vld [vmem:[%s91] sm:$0xff]
    %s93 = scalar_lea.vmem [#allocation5], 24
    %v94 = vld [vmem:[%s93] sm:$0xff]
    %s95 = scalar_lea.vmem [#allocation5], 32
    %v96 = vld [vmem:[%s95] sm:$0xff]
    %s97 = scalar_lea.vmem [#allocation5], 40
    %v98 = vld [vmem:[%s97] sm:$0xff]
    %s99 = scalar_lea.vmem [#allocation5], 48
    %v100 = vld [vmem:[%s99] sm:$0xff]
    %s101 = scalar_lea.vmem [#allocation5], 56
    %v102 = vld [vmem:[%s101] sm:$0xff]
    %v103 = vsub.f32 %v73, %v88
    %v104 = vand.u32 2147483647, %v103
    %v105 = vmin.f32 %v104, 1.0
    %v106 = vadd.f32 %v104, %v104
    %v107 = vsub.f32 %v106, %v105
    %v108 = vmul.f32 %v105, %v107
    %v109 = vsub.f32 %v75, %v90
    %v110 = vand.u32 2147483647, %v109
    %v111 = vmin.f32 %v110, 1.0
    %v112 = vadd.f32 %v110, %v110
    %v113 = vsub.f32 %v112, %v111
    %v114 = vmul.f32 %v111, %v113
    %v115 = vadd.f32 %v108, %v114
    %v116 = vsub.f32 %v77, %v88
    %v117 = vand.u32 2147483647, %v116
    %v118 = vmin.f32 %v117, 1.0
    %v119 = vadd.f32 %v117, %v117
    %v120 = vsub.f32 %v119, %v118
    %v121 = vmul.f32 %v118, %v120
    %v122 = vsub.f32 %v79, %v90
    %v123 = vand.u32 2147483647, %v122
    %v124 = vmin.f32 %v123, 1.0
    %v125 = vadd.f32 %v123, %v123
    %v126 = vsub.f32 %v125, %v124
    %v127 = vmul.f32 %v124, %v126
    %v128 = vadd.f32 %v121, %v127
    %v129 = vsub.f32 %v81, %v88
    %v130 = vand.u32 2147483647, %v129
    %v131 = vmin.f32 %v130, 1.0
    %v132 = vadd.f32 %v130, %v130
    %v133 = vsub.f32 %v132, %v131
    %v134 = vmul.f32 %v131, %v133
    %v135 = vsub.f32 %v83, %v90
    %v136 = vand.u32 2147483647, %v135
    %v137 = vmin.f32 %v136, 1.0
    %v138 = vadd.f32 %v136, %v136
    %v139 = vsub.f32 %v138, %v137
    %v140 = vmul.f32 %v137, %v139
    %v141 = vadd.f32 %v134, %v140
    %v142 = vsub.f32 %v85, %v88
    %v143 = vand.u32 2147483647, %v142
    %v144 = vmin.f32 %v143, 1.0
    %v145 = vadd.f32 %v143, %v143
    %v146 = vsub.f32 %v145, %v144
    %v147 = vmul.f32 %v144, %v146
    %v148 = vsub.f32 %v87, %v90
    %v149 = vand.u32 2147483647, %v148
    %v150 = vmin.f32 %v149, 1.0
    %v151 = vadd.f32 %v149, %v149
    %v152 = vsub.f32 %v151, %v150
    %v153 = vmul.f32 %v150, %v152
    %v154 = vadd.f32 %v147, %v153
    %v155 = vsub.f32 %v73, %v92
    %v156 = vand.u32 2147483647, %v155
    %v157 = vmin.f32 %v156, 1.0
    %v158 = vadd.f32 %v156, %v156
    %v159 = vsub.f32 %v158, %v157
    %v160 = vmul.f32 %v157, %v159
    %v161 = vsub.f32 %v75, %v94
    %v162 = vand.u32 2147483647, %v161
    %v163 = vmin.f32 %v162, 1.0
    %v164 = vadd.f32 %v162, %v162
    %v165 = vsub.f32 %v164, %v163
    %v166 = vmul.f32 %v163, %v165
    %v167 = vadd.f32 %v160, %v166
    %v168 = vsub.f32 %v77, %v92
    %v169 = vand.u32 2147483647, %v168
    %v170 = vmin.f32 %v169, 1.0
    %v171 = vadd.f32 %v169, %v169
    %v172 = vsub.f32 %v171, %v170
    %v173 = vmul.f32 %v170, %v172
    %v174 = vsub.f32 %v79, %v94
    %v175 = vand.u32 2147483647, %v174
    %v176 = vmin.f32 %v175, 1.0
    %v177 = vadd.f32 %v175, %v175
    %v178 = vsub.f32 %v177, %v176
    %v179 = vmul.f32 %v176, %v178
    %v180 = vadd.f32 %v173, %v179
    %v181 = vsub.f32 %v81, %v92
    %v182 = vand.u32 2147483647, %v181
    %v183 = vmin.f32 %v182, 1.0
    %v184 = vadd.f32 %v182, %v182
    %v185 = vsub.f32 %v184, %v183
    %v186 = vmul.f32 %v183, %v185
    %v187 = vsub.f32 %v83, %v94
    %v188 = vand.u32 2147483647, %v187
    %v189 = vmin.f32 %v188, 1.0
    %v190 = vadd.f32 %v188, %v188
    %v191 = vsub.f32 %v190, %v189
    %v192 = vmul.f32 %v189, %v191
    %v193 = vadd.f32 %v186, %v192
    %v194 = vsub.f32 %v85, %v92
    %v195 = vand.u32 2147483647, %v194
    %v196 = vmin.f32 %v195, 1.0
    %v197 = vadd.f32 %v195, %v195
    %v198 = vsub.f32 %v197, %v196
    %v199 = vmul.f32 %v196, %v198
    %v200 = vsub.f32 %v87, %v94
    %v201 = vand.u32 2147483647, %v200
    %v202 = vmin.f32 %v201, 1.0
    %v203 = vadd.f32 %v201, %v201
    %v204 = vsub.f32 %v203, %v202
    %v205 = vmul.f32 %v202, %v204
    %v206 = vadd.f32 %v199, %v205
    %v207 = vsub.f32 %v73, %v96
    %v208 = vand.u32 2147483647, %v207
    %v209 = vmin.f32 %v208, 1.0
    %v210 = vadd.f32 %v208, %v208
    %v211 = vsub.f32 %v210, %v209
    %v212 = vmul.f32 %v209, %v211
    %v213 = vsub.f32 %v75, %v98
    %v214 = vand.u32 2147483647, %v213
    %v215 = vmin.f32 %v214, 1.0
    %v216 = vadd.f32 %v214, %v214
    %v217 = vsub.f32 %v216, %v215
    %v218 = vmul.f32 %v215, %v217
    %v219 = vadd.f32 %v212, %v218
    %v220 = vsub.f32 %v77, %v96
    %v221 = vand.u32 2147483647, %v220
    %v222 = vmin.f32 %v221, 1.0
    %v223 = vadd.f32 %v221, %v221
    %v224 = vsub.f32 %v223, %v222
    %v225 = vmul.f32 %v222, %v224
    %v226 = vsub.f32 %v79, %v98
    %v227 = vand.u32 2147483647, %v226
    %v228 = vmin.f32 %v227, 1.0
    %v229 = vadd.f32 %v227, %v227
    %v230 = vsub.f32 %v229, %v228
    %v231 = vmul.f32 %v228, %v230
    %v232 = vadd.f32 %v225, %v231
    %v233 = vsub.f32 %v81, %v96
    %v234 = vand.u32 2147483647, %v233
    %v235 = vmin.f32 %v234, 1.0
    %v236 = vadd.f32 %v234, %v234
    %v237 = vsub.f32 %v236, %v235
    %v238 = vmul.f32 %v235, %v237
    %v239 = vsub.f32 %v83, %v98
    %v240 = vand.u32 2147483647, %v239
    %v241 = vmin.f32 %v240, 1.0
    %v242 = vadd.f32 %v240, %v240
    %v243 = vsub.f32 %v242, %v241
    %v244 = vmul.f32 %v241, %v243
    %v245 = vadd.f32 %v238, %v244
    %v246 = vsub.f32 %v85, %v96
    %v247 = vand.u32 2147483647, %v246
    %v248 = vmin.f32 %v247, 1.0
    %v249 = vadd.f32 %v247, %v247
    %v250 = vsub.f32 %v249, %v248
    %v251 = vmul.f32 %v248, %v250
    %v252 = vsub.f32 %v87, %v98
    %v253 = vand.u32 2147483647, %v252
    %v254 = vmin.f32 %v253, 1.0
    %v255 = vadd.f32 %v253, %v253
    %v256 = vsub.f32 %v255, %v254
    %v257 = vmul.f32 %v254, %v256
    %v258 = vadd.f32 %v251, %v257
    %v259 = vsub.f32 %v73, %v100
    %v260 = vand.u32 2147483647, %v259
    %v261 = vmin.f32 %v260, 1.0
    %v262 = vadd.f32 %v260, %v260
    %v263 = vsub.f32 %v262, %v261
    %v264 = vmul.f32 %v261, %v263
    %v265 = vsub.f32 %v75, %v102
    %v266 = vand.u32 2147483647, %v265
    %v267 = vmin.f32 %v266, 1.0
    %v268 = vadd.f32 %v266, %v266
    %v269 = vsub.f32 %v268, %v267
    %v270 = vmul.f32 %v267, %v269
    %v271 = vadd.f32 %v264, %v270
    %v272 = vsub.f32 %v77, %v100
    %v273 = vand.u32 2147483647, %v272
    %v274 = vmin.f32 %v273, 1.0
    %v275 = vadd.f32 %v273, %v273
    %v276 = vsub.f32 %v275, %v274
    %v277 = vmul.f32 %v274, %v276
    %v278 = vsub.f32 %v79, %v102
    %v279 = vand.u32 2147483647, %v278
    %v280 = vmin.f32 %v279, 1.0
    %v281 = vadd.f32 %v279, %v279
    %v282 = vsub.f32 %v281, %v280
    %v283 = vmul.f32 %v280, %v282
    %v284 = vadd.f32 %v277, %v283
    %v285 = vsub.f32 %v81, %v100
    %v286 = vand.u32 2147483647, %v285
    %v287 = vmin.f32 %v286, 1.0
    %v288 = vadd.f32 %v286, %v286
    %v289 = vsub.f32 %v288, %v287
    %v290 = vmul.f32 %v287, %v289
    %v291 = vsub.f32 %v83, %v102
    %v292 = vand.u32 2147483647, %v291
    %v293 = vmin.f32 %v292, 1.0
    %v294 = vadd.f32 %v292, %v292
    %v295 = vsub.f32 %v294, %v293
    %v296 = vmul.f32 %v293, %v295
    %v297 = vadd.f32 %v290, %v296
    %v298 = vsub.f32 %v85, %v100
    %v299 = vand.u32 2147483647, %v298
    %v300 = vmin.f32 %v299, 1.0
    %v301 = vadd.f32 %v299, %v299
    %v302 = vsub.f32 %v301, %v300
    %v303 = vmul.f32 %v300, %v302
    %v304 = vsub.f32 %v87, %v102
    %v305 = vand.u32 2147483647, %v304
    %v306 = vmin.f32 %v305, 1.0
    %v307 = vadd.f32 %v305, %v305
    %v308 = vsub.f32 %v307, %v306
    %v309 = vmul.f32 %v306, %v308
    %v310 = vadd.f32 %v303, %v309
    %v311 = vadd.f32 %v115, %v180
    %v312 = vadd.f32 %v128, %v167
    %v313 = vmin.f32 %v311, %v312
    %v314 = vadd.f32 %v245, %v310
    %v315 = vadd.f32 %v258, %v297
    %v316 = vmin.f32 %v314, %v315
    %v317 = vadd.f32 %v313, %v316
    %v318 = vadd.f32 %v115, %v193
    %v319 = vadd.f32 %v141, %v167
    %v320 = vmin.f32 %v318, %v319
    %v321 = vadd.f32 %v232, %v310
    %v322 = vadd.f32 %v258, %v284
    %v323 = vmin.f32 %v321, %v322
    %v324 = vadd.f32 %v320, %v323
    %v325 = vmin.f32 %v317, %v324
    %v326 = vadd.f32 %v115, %v206
    %v327 = vadd.f32 %v154, %v167
    %v328 = vmin.f32 %v326, %v327
    %v329 = vadd.f32 %v232, %v297
    %v330 = vadd.f32 %v245, %v284
    %v331 = vmin.f32 %v329, %v330
    %v332 = vadd.f32 %v328, %v331
    %v333 = vmin.f32 %v325, %v332
    %v334 = vadd.f32 %v128, %v193
    %v335 = vadd.f32 %v141, %v180
    %v336 = vmin.f32 %v334, %v335
    %v337 = vadd.f32 %v219, %v310
    %v338 = vadd.f32 %v258, %v271
    %v339 = vmin.f32 %v337, %v338
    %v340 = vadd.f32 %v336, %v339
    %v341 = vmin.f32 %v333, %v340
    %v342 = vadd.f32 %v128, %v206
    %v343 = vadd.f32 %v154, %v180
    %v344 = vmin.f32 %v342, %v343
    %v345 = vadd.f32 %v219, %v297
    %v346 = vadd.f32 %v245, %v271
    %v347 = vmin.f32 %v345, %v346
    %v348 = vadd.f32 %v344, %v347
    %v349 = vmin.f32 %v341, %v348
    %v350 = vadd.f32 %v141, %v206
    %v351 = vadd.f32 %v154, %v193
    %v352 = vmin.f32 %v350, %v351
    %v353 = vadd.f32 %v219, %v284
    %v354 = vadd.f32 %v232, %v271
    %v355 = vmin.f32 %v353, %v354
    %v356 = vadd.f32 %v352, %v355
    %v357 = vmin.f32 %v349, %v356
    %v358 = vsel %vm72, %v357, 0.0
    %v359 = vld [vmem:[#allocation8] sm:$0xff]
    %v360 = vadd.f32 %v359, %v358
    %361 = vst [vmem:[#allocation8] sm:$0xff] %v360
    // Predicated region
    $region30: #{tpu_custom_call.1} parent=1 // pred_check
      _
    $region31: #{tpu_custom_call.1} parent=1 // pred_check_branch
      %363 = sbr.rel (0) target = $region33
    $region32: #{tpu_custom_call.1} parent=1 // pred_region
      %s365 = ssub.s32 128, 128
      %366 = vsyncadd [#allocation4], %s365
      %s368 = sshll.u32 [#allocation8], 4
      %s369 = int_to_ptr.vmem [resolvable:$true] %s368
      %371 = dma.vmem_to_hbm [thread:$0]  %s369, 128, %s3, [#allocation4]
    $region33: #{tpu_custom_call.1} parent=1 // pred_fallthru
      _
    // Predicated region
    $region34: #{tpu_custom_call.1} parent=1 // pred_check
      _
    $region35: #{tpu_custom_call.1} parent=1 // pred_check_branch
      %373 = sbr.rel (0) target = $region37
    $region36: #{tpu_custom_call.1} parent=1 // pred_region
      %374 = dma.done [#allocation4], 128
    $region37: #{tpu_custom_call.1} parent=1 // pred_fallthru
      _
    %375 = vsyncpa [#allocation3], 1
    %376 = vsyncpa [#allocation6], 1
    %377 = vsyncpa [#allocation4], 1

</llo_original>
